<compile_context>
chip_gen: v7x
topology: tpu7x:2x2x1
jax: 0.10.0
libtpu: 0.0.40
codegen_flags: <defaults>
</compile_context>

<pallas_src>
import jax
import jax.numpy as jnp
from jax.experimental import pallas as pl
from jax.experimental.pallas import tpu as pltpu


def _acp_kernel(w1_ref, w2_ref, xt_ref, yt_ref, xhatt_ref):
    # Lane-dense layout: batch on lanes, features on sublanes.
    #   w1_ref : (output_dim, input_dim)   == PyTorch dense1_mean.weight
    #   w2_ref : (input_dim, output_dim)   == PyTorch dense2.weight
    #   xt_ref : (input_dim, TN)           == x.T tile
    xt = xt_ref[...].astype(jnp.float32)
    w1 = w1_ref[...].astype(jnp.float32)
    w2 = w2_ref[...].astype(jnp.float32)

    input_dim = xt_ref.shape[0]
    output_dim = w1_ref.shape[0]

    # encode: y_t = W1 @ x_t, unrolled as K=input_dim broadcast-MACs on the VPU.
    yt = w1[:, 0:1] * xt[0:1, :]                      # (output_dim, TN)
    for k in range(1, input_dim):
        yt = yt + w1[:, k : k + 1] * xt[k : k + 1, :]
    yt_ref[...] = yt.astype(yt_ref.dtype)

    # decode: xhat_t = W2 @ y_t, unrolled as K=output_dim broadcast-MACs
    # (reuses the f32 accumulator yt, not the stored/rounded value).
    xhatt = w2[:, 0:1] * yt[0:1, :]                   # (input_dim, TN)
    for o in range(1, output_dim):
        xhatt = xhatt + w2[:, o : o + 1] * yt[o : o + 1, :]
    xhatt_ref[...] = xhatt.astype(xhatt_ref.dtype)


def _round_up(a, b):
    return ((a + b - 1) // b) * b


def acp_model0_forward(x, w1_weight, w2_weight, *, tn=1024):
    """Forward pass of ACP_model0.

    x         : (N, input_dim)
    w1_weight : (output_dim, input_dim)  -- PyTorch dense1_mean.weight layout
    w2_weight : (input_dim, output_dim)  -- PyTorch dense2.weight layout

    Returns (y, xhat) with y = x @ w1_weight.T and xhat = y @ w2_weight.T,
    matching nn.Linear(bias=False) semantics of the original module.
    """
    n, input_dim = x.shape
    output_dim = w1_weight.shape[0]

    # Lane-aligned batch tiling: TN is a multiple of 128; a single tile if N is small.
    tn = max(128, min(tn, _round_up(n, 128)))
    n_pad = _round_up(n, tn)
    grid = (n_pad // tn,)

    # Lane-dense layout: batch on the last (lane) axis; zero-pad the ragged tail.
    xt = jnp.transpose(x)                             # (input_dim, N)
    if n_pad != n:
        xt = jnp.pad(xt, ((0, 0), (0, n_pad - n)))

    yt, xhatt = pl.pallas_call(
        _acp_kernel,
        out_shape=(
            jax.ShapeDtypeStruct((output_dim, n_pad), x.dtype),
            jax.ShapeDtypeStruct((input_dim, n_pad), x.dtype),
        ),
        grid=grid,
        in_specs=[
            # Tiny weights: full blocks, constant index_map -> DMA'd once, VMEM-resident.
            pl.BlockSpec((output_dim, input_dim), lambda i: (0, 0)),
            pl.BlockSpec((input_dim, output_dim), lambda i: (0, 0)),
            # Activations: tiled over the lane-dense batch axis.
            pl.BlockSpec((input_dim, tn), lambda i: (0, i)),
        ],
        out_specs=[
            pl.BlockSpec((output_dim, tn), lambda i: (0, i)),
            pl.BlockSpec((input_dim, tn), lambda i: (0, i)),
        ],
        compiler_params=pltpu.CompilerParams(
            # Batch tiles are independent -> shard across both TCs on v7x.
            dimension_semantics=("parallel",),
        ),
    )(w1_weight, w2_weight, xt)

    y = jnp.transpose(yt[:, :n])
    xhat = jnp.transpose(xhatt[:, :n])
    return y, xhat


if __name__ == "__main__":
    # Shapes implied by the module's construction: K is (2, 5) -> input_dim = 5,
    # output_dim = 2, and the script uses n = 1000 rows.
    n, input_dim, output_dim = 1000, 5, 2

    key = jax.random.PRNGKey(0)
    k_k, k_st, k_w1, k_w2 = jax.random.split(key, 4)

    # Synthetic data mirroring the numpy construction: x = (s,t) @ K, K ~ N(0,1)*3.
    K = jax.random.normal(k_k, (2, input_dim), dtype=jnp.float32) * 3.0
    st = jax.random.normal(k_st, (n, 2), dtype=jnp.float32)
    x = st @ K                                        # (n, input_dim)

    # nn.Linear default init: uniform(-1/sqrt(fan_in), 1/sqrt(fan_in)), bias=False.
    b1 = 1.0 / jnp.sqrt(jnp.float32(input_dim))
    b2 = 1.0 / jnp.sqrt(jnp.float32(output_dim))
    w1_weight = jax.random.uniform(k_w1, (output_dim, input_dim), jnp.float32, -b1, b1)
    w2_weight = jax.random.uniform(k_w2, (input_dim, output_dim), jnp.float32, -b2, b2)

    y, xhat = acp_model0_forward(x, w1_weight, w2_weight)
    jax.block_until_ready((y, xhat))

    # Pure-JAX reference of the PyTorch forward: y = x @ W1.T, xhat = y @ W2.T.
    y_ref = x @ w1_weight.T
    xhat_ref = y_ref @ w2_weight.T
    assert y.shape == (n, output_dim) and xhat.shape == (n, input_dim)
    assert jnp.allclose(y, y_ref, atol=1e-5, rtol=1e-5)
    assert jnp.allclose(xhat, xhat_ref, atol=1e-5, rtol=1e-5)

    print("KERNEL_OK")
</pallas_src>

<mosaic_0001>
module attributes {stable_mosaic.version = 11 : i64} {
  func.func @_acp_kernel(%arg0: i32, %arg1: memref<2x5xf32, #tpu.memory_space<vmem>>, %arg2: memref<5x2xf32, #tpu.memory_space<vmem>>, %arg3: memref<5x1024xf32, #tpu.memory_space<vmem>>, %arg4: memref<2x1024xf32, #tpu.memory_space<vmem>>, %arg5: memref<5x1024xf32, #tpu.memory_space<vmem>>) attributes {dimension_semantics = [#tpu.dimension_semantics<parallel>], iteration_bounds = array<i64: 1>, scalar_prefetch = 0 : i64, scratch_operands = 0 : i64, tpu.core_type = #tpu.core_type<tc>, window_params = [{pipeline_mode = #tpu.pipeline_mode<synchronous>, transform_indices = @transform_0, window_bounds = array<i64: 2, 5>}, {pipeline_mode = #tpu.pipeline_mode<synchronous>, transform_indices = @transform_1, window_bounds = array<i64: 5, 2>}, {transform_indices = @transform_2, window_bounds = array<i64: 5, 1024>}, {transform_indices = @transform_3, window_bounds = array<i64: 2, 1024>}, {transform_indices = @transform_4, window_bounds = array<i64: 5, 1024>}]} {
    %c0 = arith.constant 0 : index
    %c0_0 = arith.constant 0 : index
    %0 = vector.load %arg3[%c0, %c0_0] : memref<5x1024xf32, #tpu.memory_space<vmem>>, vector<5x1024xf32>
    %c0_1 = arith.constant 0 : index
    %c0_2 = arith.constant 0 : index
    %1 = vector.load %arg1[%c0_1, %c0_2] : memref<2x5xf32, #tpu.memory_space<vmem>>, vector<2x5xf32>
    %c0_3 = arith.constant 0 : index
    %c0_4 = arith.constant 0 : index
    %2 = vector.load %arg2[%c0_3, %c0_4] : memref<5x2xf32, #tpu.memory_space<vmem>>, vector<5x2xf32>
    %3 = vector.extract_strided_slice %1 {offsets = [0, 0], sizes = [2, 1], strides = [1, 1]} : vector<2x5xf32> to vector<2x1xf32>
    %4 = vector.extract_strided_slice %0 {offsets = [0, 0], sizes = [1, 1024], strides = [1, 1]} : vector<5x1024xf32> to vector<1x1024xf32>
    %5 = vector.broadcast %3 : vector<2x1xf32> to vector<2x1024xf32>
    %6 = vector.broadcast %4 : vector<1x1024xf32> to vector<2x1024xf32>
    %7 = arith.mulf %5, %6 : vector<2x1024xf32>
    %8 = vector.extract_strided_slice %1 {offsets = [0, 1], sizes = [2, 1], strides = [1, 1]} : vector<2x5xf32> to vector<2x1xf32>
    %9 = vector.extract_strided_slice %0 {offsets = [1, 0], sizes = [1, 1024], strides = [1, 1]} : vector<5x1024xf32> to vector<1x1024xf32>
    %10 = vector.broadcast %8 : vector<2x1xf32> to vector<2x1024xf32>
    %11 = vector.broadcast %9 : vector<1x1024xf32> to vector<2x1024xf32>
    %12 = arith.mulf %10, %11 : vector<2x1024xf32>
    %13 = arith.addf %7, %12 : vector<2x1024xf32>
    %14 = vector.extract_strided_slice %1 {offsets = [0, 2], sizes = [2, 1], strides = [1, 1]} : vector<2x5xf32> to vector<2x1xf32>
    %15 = vector.extract_strided_slice %0 {offsets = [2, 0], sizes = [1, 1024], strides = [1, 1]} : vector<5x1024xf32> to vector<1x1024xf32>
    %16 = vector.broadcast %14 : vector<2x1xf32> to vector<2x1024xf32>
    %17 = vector.broadcast %15 : vector<1x1024xf32> to vector<2x1024xf32>
    %18 = arith.mulf %16, %17 : vector<2x1024xf32>
    %19 = arith.addf %13, %18 : vector<2x1024xf32>
    %20 = vector.extract_strided_slice %1 {offsets = [0, 3], sizes = [2, 1], strides = [1, 1]} : vector<2x5xf32> to vector<2x1xf32>
    %21 = vector.extract_strided_slice %0 {offsets = [3, 0], sizes = [1, 1024], strides = [1, 1]} : vector<5x1024xf32> to vector<1x1024xf32>
    %22 = vector.broadcast %20 : vector<2x1xf32> to vector<2x1024xf32>
    %23 = vector.broadcast %21 : vector<1x1024xf32> to vector<2x1024xf32>
    %24 = arith.mulf %22, %23 : vector<2x1024xf32>
    %25 = arith.addf %19, %24 : vector<2x1024xf32>
    %26 = vector.extract_strided_slice %1 {offsets = [0, 4], sizes = [2, 1], strides = [1, 1]} : vector<2x5xf32> to vector<2x1xf32>
    %27 = vector.extract_strided_slice %0 {offsets = [4, 0], sizes = [1, 1024], strides = [1, 1]} : vector<5x1024xf32> to vector<1x1024xf32>
    %28 = vector.broadcast %26 : vector<2x1xf32> to vector<2x1024xf32>
    %29 = vector.broadcast %27 : vector<1x1024xf32> to vector<2x1024xf32>
    %30 = arith.mulf %28, %29 : vector<2x1024xf32>
    %31 = arith.addf %25, %30 : vector<2x1024xf32>
    %c0_5 = arith.constant 0 : index
    %c0_6 = arith.constant 0 : index
    %32 = vector.load %arg4[%c0_5, %c0_6] : memref<2x1024xf32, #tpu.memory_space<vmem>>, vector<2x1024xf32>
    tpu.vector_store %arg4[%c0_5, %c0_6], %31 {strides = array<i32>} : memref<2x1024xf32, #tpu.memory_space<vmem>>, vector<2x1024xf32>,
    %33 = vector.extract_strided_slice %2 {offsets = [0, 0], sizes = [5, 1], strides = [1, 1]} : vector<5x2xf32> to vector<5x1xf32>
    %34 = vector.extract_strided_slice %31 {offsets = [0, 0], sizes = [1, 1024], strides = [1, 1]} : vector<2x1024xf32> to vector<1x1024xf32>
    %35 = vector.broadcast %33 : vector<5x1xf32> to vector<5x1024xf32>
    %36 = vector.broadcast %34 : vector<1x1024xf32> to vector<5x1024xf32>
    %37 = arith.mulf %35, %36 : vector<5x1024xf32>
    %38 = vector.extract_strided_slice %2 {offsets = [0, 1], sizes = [5, 1], strides = [1, 1]} : vector<5x2xf32> to vector<5x1xf32>
    %39 = vector.extract_strided_slice %31 {offsets = [1, 0], sizes = [1, 1024], strides = [1, 1]} : vector<2x1024xf32> to vector<1x1024xf32>
    %40 = vector.broadcast %38 : vector<5x1xf32> to vector<5x1024xf32>
    %41 = vector.broadcast %39 : vector<1x1024xf32> to vector<5x1024xf32>
    %42 = arith.mulf %40, %41 : vector<5x1024xf32>
    %43 = arith.addf %37, %42 : vector<5x1024xf32>
    %c0_7 = arith.constant 0 : index
    %c0_8 = arith.constant 0 : index
    %44 = vector.load %arg5[%c0_7, %c0_8] : memref<5x1024xf32, #tpu.memory_space<vmem>>, vector<5x1024xf32>
    tpu.vector_store %arg5[%c0_7, %c0_8], %43 {strides = array<i32>} : memref<5x1024xf32, #tpu.memory_space<vmem>>, vector<5x1024xf32>,
    return
  }
  func.func @transform_0(%arg0: i32) -> (i32, i32) {
    %c0_i32 = arith.constant 0 : i32
    %c0_i32_0 = arith.constant 0 : i32
    %c0_i32_1 = arith.constant 0 : i32
    return %c0_i32, %c0_i32_0 : i32, i32
  }
  func.func @transform_1(%arg0: i32) -> (i32, i32) {
    %c0_i32 = arith.constant 0 : i32
    %c0_i32_0 = arith.constant 0 : i32
    %c0_i32_1 = arith.constant 0 : i32
    return %c0_i32, %c0_i32_0 : i32, i32
  }
  func.func @transform_2(%arg0: i32) -> (i32, i32) {
    %c0_i32 = arith.constant 0 : i32
    %c0_i32_0 = arith.constant 0 : i32
    return %c0_i32, %arg0 : i32, i32
  }
  func.func @transform_3(%arg0: i32) -> (i32, i32) {
    %c0_i32 = arith.constant 0 : i32
    %c0_i32_0 = arith.constant 0 : i32
    return %c0_i32, %arg0 : i32, i32
  }
  func.func @transform_4(%arg0: i32) -> (i32, i32) {
    %c0_i32 = arith.constant 0 : i32
    %c0_i32_0 = arith.constant 0 : i32
    return %c0_i32, %arg0 : i32, i32
  }
}

</mosaic_0001>

<llo_original>
// kernel: tpu_custom_call.1
$region0: #{tpu_custom_call.1}
  #allocation0 [shape = 'u32[]', space=smem, size = 0x4, offset = 0x4, fixed_abs, tag = 'smem constant byte address 0x4 - core index']
  #allocation1 [shape = 'u32[144,128]{1,0:T(1,128)}', space=vmem, size = 0x12000, scoped, tag = 'internal scratch']
  %s0 = inlined_call_operand.vmem [shape: f32[2,5], index: 0, kind: input, shape index: {}]
  %s1 = inlined_call_operand.vmem [shape: f32[5,2], index: 1, kind: input, shape index: {}]
  %s2 = inlined_call_operand.hbm [shape: f32[5,1024], index: 2, kind: input, shape index: {}]
  %s3 = inlined_call_operand.hbm [shape: f32[2,1024], index: 3, kind: output, shape index: {0}]
  %s4 = inlined_call_operand.hbm [shape: f32[5,1024], index: 4, kind: output, shape index: {1}]
  %5 = xla_tuple %s3, %s4
  %s6 = sld [smem:[#allocation0]]
  $region34: #{tpu_custom_call.1} parent=0
    _
  %s8 = ssub.s32 1, %s6
  %s9 = scalar_select 0, %s8, %s6
  $region1: #{tpu_custom_call.1} parent=0
    #allocation2 [shape = 'u8[32768]{0}', space=vmem, size = 0x8000, scoped, tag = 'input window, operand 2, single buffered']
    #allocation3 [shape = 's32[1]{0}', space=sflag, size = 0x4, scoped, tag = 'scoped memory for tpu_custom_call.1']
    #allocation4 [shape = 's32[1]{0}', space=sflag, size = 0x4, scoped, tag = 'scoped memory for tpu_custom_call.1']
    #allocation5 [shape = 'u8[8192]{0}', space=vmem, size = 0x2000, scoped, tag = 'output window, operand 0, single buffered']
    #allocation6 [shape = 'u8[32768]{0}', space=vmem, size = 0x8000, scoped, tag = 'output window, operand 1, single buffered']
    #allocation7 [shape = 's32[1]{0}', space=sflag, size = 0x4, scoped, tag = 'scoped memory for tpu_custom_call.1']
    %10 = vsyncpa [#allocation3], 0
    %11 = vsyncpa [#allocation4], 0
    %12 = vsyncpa [#allocation7], 0
    // Predicated region
    $region2: #{tpu_custom_call.1} parent=1 // pred_check
      _
    $region3: #{tpu_custom_call.1} parent=1 // pred_check_branch
      %14 = sbr.rel (0) target = $region5
    $region4: #{tpu_custom_call.1} parent=1 // pred_region
      _
    $region5: #{tpu_custom_call.1} parent=1 // pred_fallthru
      _
    // Predicated region
    $region6: #{tpu_custom_call.1} parent=1 // pred_check
      _
    $region7: #{tpu_custom_call.1} parent=1 // pred_check_branch
      %16 = sbr.rel (0) target = $region9
    $region8: #{tpu_custom_call.1} parent=1 // pred_region
      _
    $region9: #{tpu_custom_call.1} parent=1 // pred_fallthru
      _
    // Predicated region
    $region10: #{tpu_custom_call.1} parent=1 // pred_check
      _
    $region11: #{tpu_custom_call.1} parent=1 // pred_check_branch
      %18 = sbr.rel (0) target = $region13
    $region12: #{tpu_custom_call.1} parent=1 // pred_region
      %s20 = ssub.s32 1024, 1024
      %21 = vsyncadd [#allocation3], %s20
      %s23 = sshll.u32 [#allocation2], 4
      %s24 = int_to_ptr.vmem [resolvable:$true] %s23
      %26 = dma.hbm_to_vmem [thread:$0]  %s2, 1024, %s24, [#allocation3]
    $region13: #{tpu_custom_call.1} parent=1 // pred_fallthru
      _
    // Predicated region
    $region14: #{tpu_custom_call.1} parent=1 // pred_check
      _
    $region15: #{tpu_custom_call.1} parent=1 // pred_check_branch
      %28 = sbr.rel (0) target = $region17
    $region16: #{tpu_custom_call.1} parent=1 // pred_region
      %29 = dma.done [#allocation3], 1024
    $region17: #{tpu_custom_call.1} parent=1 // pred_fallthru
      _
    %v30 = vld [vmem:[#allocation2] sm:$0x1f]
    %v31 = vld [vmem:[#allocation2 + $0x8] sm:$0x1f]
    %v32 = vld [vmem:[#allocation2 + $0x10] sm:$0x1f]
    %v33 = vld [vmem:[#allocation2 + $0x18] sm:$0x1f]
    %v34 = vld [vmem:[#allocation2 + $0x20] sm:$0x1f]
    %v35 = vld [vmem:[#allocation2 + $0x28] sm:$0x1f]
    %v36 = vld [vmem:[#allocation2 + $0x30] sm:$0x1f]
    %v37 = vld [vmem:[#allocation2 + $0x38] sm:$0x1f]
    %v38 = vld [vmem:[%s0] sm:$0x3]
    %v39 = vld [vmem:[%s1] sm:$0x1f]
    %41 = vset.pattern.permute.xlu0 0
    %42 = vperm.xlu0 %41, %v38
    %v43 = vpop.permute.xlu0 %42
    %v45 = vlaneseq
    %v46 = vshrl.u32 %v45, 7
    %v47 = vsub.s32 0, %v46
    %v48 = vrot.slane %v30, %v47
    %v49 = vlaneseq
    %v50 = vshrl.u32 %v49, 7
    %v51 = vsub.s32 0, %v50
    %v52 = vrot.slane %v31, %v51
    %v53 = vlaneseq
    %v54 = vshrl.u32 %v53, 7
    %v55 = vsub.s32 0, %v54
    %v56 = vrot.slane %v32, %v55
    %v57 = vlaneseq
    %v58 = vshrl.u32 %v57, 7
    %v59 = vsub.s32 0, %v58
    %v60 = vrot.slane %v33, %v59
    %v61 = vlaneseq
    %v62 = vshrl.u32 %v61, 7
    %v63 = vsub.s32 0, %v62
    %v64 = vrot.slane %v34, %v63
    %v65 = vlaneseq
    %v66 = vshrl.u32 %v65, 7
    %v67 = vsub.s32 0, %v66
    %v68 = vrot.slane %v35, %v67
    %v69 = vlaneseq
    %v70 = vshrl.u32 %v69, 7
    %v71 = vsub.s32 0, %v70
    %v72 = vrot.slane %v36, %v71
    %v73 = vlaneseq
    %v74 = vshrl.u32 %v73, 7
    %v75 = vsub.s32 0, %v74
    %v76 = vrot.slane %v37, %v75
    %v77 = vmul.f32 %v43, %v48
    %v78 = vmul.f32 %v43, %v52
    %v79 = vmul.f32 %v43, %v56
    %v80 = vmul.f32 %v43, %v60
    %v81 = vmul.f32 %v43, %v64
    %v82 = vmul.f32 %v43, %v68
    %v83 = vmul.f32 %v43, %v72
    %v84 = vmul.f32 %v43, %v76
    %85 = vset.pattern.permute.xlu0 1
    %86 = vperm.xlu0 %85, %v38
    %v87 = vpop.permute.xlu0 %86
    %v89 = vlaneseq
    %v90 = vshrl.u32 %v89, 7
    %v91 = vsub.s32 1, %v90
    %v92 = vrot.slane %v30, %v91
    %v93 = vlaneseq
    %v94 = vshrl.u32 %v93, 7
    %v95 = vsub.s32 1, %v94
    %v96 = vrot.slane %v31, %v95
    %v97 = vlaneseq
    %v98 = vshrl.u32 %v97, 7
    %v99 = vsub.s32 1, %v98
    %v100 = vrot.slane %v32, %v99
    %v101 = vlaneseq
    %v102 = vshrl.u32 %v101, 7
    %v103 = vsub.s32 1, %v102
    %v104 = vrot.slane %v33, %v103
    %v105 = vlaneseq
    %v106 = vshrl.u32 %v105, 7
    %v107 = vsub.s32 1, %v106
    %v108 = vrot.slane %v34, %v107
    %v109 = vlaneseq
    %v110 = vshrl.u32 %v109, 7
    %v111 = vsub.s32 1, %v110
    %v112 = vrot.slane %v35, %v111
    %v113 = vlaneseq
    %v114 = vshrl.u32 %v113, 7
    %v115 = vsub.s32 1, %v114
    %v116 = vrot.slane %v36, %v115
    %v117 = vlaneseq
    %v118 = vshrl.u32 %v117, 7
    %v119 = vsub.s32 1, %v118
    %v120 = vrot.slane %v37, %v119
    %v121 = vmul.f32 %v87, %v92
    %v122 = vmul.f32 %v87, %v96
    %v123 = vmul.f32 %v87, %v100
    %v124 = vmul.f32 %v87, %v104
    %v125 = vmul.f32 %v87, %v108
    %v126 = vmul.f32 %v87, %v112
    %v127 = vmul.f32 %v87, %v116
    %v128 = vmul.f32 %v87, %v120
    %v129 = vadd.f32 %v77, %v121
    %v130 = vadd.f32 %v78, %v122
    %v131 = vadd.f32 %v79, %v123
    %v132 = vadd.f32 %v80, %v124
    %v133 = vadd.f32 %v81, %v125
    %v134 = vadd.f32 %v82, %v126
    %v135 = vadd.f32 %v83, %v127
    %v136 = vadd.f32 %v84, %v128
    %137 = vset.pattern.permute.xlu0 2
    %138 = vperm.xlu0 %137, %v38
    %v139 = vpop.permute.xlu0 %138
    %v141 = vlaneseq
    %v142 = vshrl.u32 %v141, 7
    %v143 = vsub.s32 2, %v142
    %v144 = vrot.slane %v30, %v143
    %v145 = vlaneseq
    %v146 = vshrl.u32 %v145, 7
    %v147 = vsub.s32 2, %v146
    %v148 = vrot.slane %v31, %v147
    %v149 = vlaneseq
    %v150 = vshrl.u32 %v149, 7
    %v151 = vsub.s32 2, %v150
    %v152 = vrot.slane %v32, %v151
    %v153 = vlaneseq
    %v154 = vshrl.u32 %v153, 7
    %v155 = vsub.s32 2, %v154
    %v156 = vrot.slane %v33, %v155
    %v157 = vlaneseq
    %v158 = vshrl.u32 %v157, 7
    %v159 = vsub.s32 2, %v158
    %v160 = vrot.slane %v34, %v159
    %v161 = vlaneseq
    %v162 = vshrl.u32 %v161, 7
    %v163 = vsub.s32 2, %v162
    %v164 = vrot.slane %v35, %v163
    %v165 = vlaneseq
    %v166 = vshrl.u32 %v165, 7
    %v167 = vsub.s32 2, %v166
    %v168 = vrot.slane %v36, %v167
    %v169 = vlaneseq
    %v170 = vshrl.u32 %v169, 7
    %v171 = vsub.s32 2, %v170
    %v172 = vrot.slane %v37, %v171
    %v173 = vmul.f32 %v139, %v144
    %v174 = vmul.f32 %v139, %v148
    %v175 = vmul.f32 %v139, %v152
    %v176 = vmul.f32 %v139, %v156
    %v177 = vmul.f32 %v139, %v160
    %v178 = vmul.f32 %v139, %v164
    %v179 = vmul.f32 %v139, %v168
    %v180 = vmul.f32 %v139, %v172
    %v181 = vadd.f32 %v129, %v173
    %v182 = vadd.f32 %v130, %v174
    %v183 = vadd.f32 %v131, %v175
    %v184 = vadd.f32 %v132, %v176
    %v185 = vadd.f32 %v133, %v177
    %v186 = vadd.f32 %v134, %v178
    %v187 = vadd.f32 %v135, %v179
    %v188 = vadd.f32 %v136, %v180
    %189 = vset.pattern.permute.xlu0 3
    %190 = vperm.xlu0 %189, %v38
    %v191 = vpop.permute.xlu0 %190
    %v193 = vlaneseq
    %v194 = vshrl.u32 %v193, 7
    %v195 = vsub.s32 3, %v194
    %v196 = vrot.slane %v30, %v195
    %v197 = vlaneseq
    %v198 = vshrl.u32 %v197, 7
    %v199 = vsub.s32 3, %v198
    %v200 = vrot.slane %v31, %v199
    %v201 = vlaneseq
    %v202 = vshrl.u32 %v201, 7
    %v203 = vsub.s32 3, %v202
    %v204 = vrot.slane %v32, %v203
    %v205 = vlaneseq
    %v206 = vshrl.u32 %v205, 7
    %v207 = vsub.s32 3, %v206
    %v208 = vrot.slane %v33, %v207
    %v209 = vlaneseq
    %v210 = vshrl.u32 %v209, 7
    %v211 = vsub.s32 3, %v210
    %v212 = vrot.slane %v34, %v211
    %v213 = vlaneseq
    %v214 = vshrl.u32 %v213, 7
    %v215 = vsub.s32 3, %v214
    %v216 = vrot.slane %v35, %v215
    %v217 = vlaneseq
    %v218 = vshrl.u32 %v217, 7
    %v219 = vsub.s32 3, %v218
    %v220 = vrot.slane %v36, %v219
    %v221 = vlaneseq
    %v222 = vshrl.u32 %v221, 7
    %v223 = vsub.s32 3, %v222
    %v224 = vrot.slane %v37, %v223
    %v225 = vmul.f32 %v191, %v196
    %v226 = vmul.f32 %v191, %v200
    %v227 = vmul.f32 %v191, %v204
    %v228 = vmul.f32 %v191, %v208
    %v229 = vmul.f32 %v191, %v212
    %v230 = vmul.f32 %v191, %v216
    %v231 = vmul.f32 %v191, %v220
    %v232 = vmul.f32 %v191, %v224
    %v233 = vadd.f32 %v181, %v225
    %v234 = vadd.f32 %v182, %v226
    %v235 = vadd.f32 %v183, %v227
    %v236 = vadd.f32 %v184, %v228
    %v237 = vadd.f32 %v185, %v229
    %v238 = vadd.f32 %v186, %v230
    %v239 = vadd.f32 %v187, %v231
    %v240 = vadd.f32 %v188, %v232
    %241 = vset.pattern.permute.xlu0 4
    %242 = vperm.xlu0 %241, %v38
    %v243 = vpop.permute.xlu0 %242
    %v245 = vlaneseq
    %v246 = vshrl.u32 %v245, 7
    %v247 = vsub.s32 4, %v246
    %v248 = vrot.slane %v30, %v247
    %v249 = vlaneseq
    %v250 = vshrl.u32 %v249, 7
    %v251 = vsub.s32 4, %v250
    %v252 = vrot.slane %v31, %v251
    %v253 = vlaneseq
    %v254 = vshrl.u32 %v253, 7
    %v255 = vsub.s32 4, %v254
    %v256 = vrot.slane %v32, %v255
    %v257 = vlaneseq
    %v258 = vshrl.u32 %v257, 7
    %v259 = vsub.s32 4, %v258
    %v260 = vrot.slane %v33, %v259
    %v261 = vlaneseq
    %v262 = vshrl.u32 %v261, 7
    %v263 = vsub.s32 4, %v262
    %v264 = vrot.slane %v34, %v263
    %v265 = vlaneseq
    %v266 = vshrl.u32 %v265, 7
    %v267 = vsub.s32 4, %v266
    %v268 = vrot.slane %v35, %v267
    %v269 = vlaneseq
    %v270 = vshrl.u32 %v269, 7
    %v271 = vsub.s32 4, %v270
    %v272 = vrot.slane %v36, %v271
    %v273 = vlaneseq
    %v274 = vshrl.u32 %v273, 7
    %v275 = vsub.s32 4, %v274
    %v276 = vrot.slane %v37, %v275
    %v277 = vmul.f32 %v243, %v248
    %v278 = vmul.f32 %v243, %v252
    %v279 = vmul.f32 %v243, %v256
    %v280 = vmul.f32 %v243, %v260
    %v281 = vmul.f32 %v243, %v264
    %v282 = vmul.f32 %v243, %v268
    %v283 = vmul.f32 %v243, %v272
    %v284 = vmul.f32 %v243, %v276
    %v285 = vadd.f32 %v233, %v277
    %v286 = vadd.f32 %v234, %v278
    %v287 = vadd.f32 %v235, %v279
    %v288 = vadd.f32 %v236, %v280
    %v289 = vadd.f32 %v237, %v281
    %v290 = vadd.f32 %v238, %v282
    %v291 = vadd.f32 %v239, %v283
    %v292 = vadd.f32 %v240, %v284
    %v301 = vcombine.low %v285, %v286
    %v302 = vcombine.low %v287, %v288
    %v304 = vunpack.c.l.s4 1983009808
    %v305 = vunpack.c.0.s8 %v304
    %v306 = vlaneseq
    %v307 = vshrl.u32 %v306, 7
    %v308 = vsub.s32 %v305, %v307
    %v309 = vrot.slane %v301, %v308
    %v311 = vunpack.c.l.s4 1983009808
    %v312 = vunpack.c.0.s8 %v311
    %v313 = vlaneseq
    %v314 = vshrl.u32 %v313, 7
    %v315 = vsub.s32 %v312, %v314
    %v316 = vrot.slane %v302, %v315
    %v317 = vcombine.low %v309, %v316
    %v318 = vcombine.low %v289, %v290
    %v319 = vcombine.low %v291, %v292
    %v321 = vunpack.c.l.s4 1983009808
    %v322 = vunpack.c.0.s8 %v321
    %v323 = vlaneseq
    %v324 = vshrl.u32 %v323, 7
    %v325 = vsub.s32 %v322, %v324
    %v326 = vrot.slane %v318, %v325
    %v328 = vunpack.c.l.s4 1983009808
    %v329 = vunpack.c.0.s8 %v328
    %v330 = vlaneseq
    %v331 = vshrl.u32 %v330, 7
    %v332 = vsub.s32 %v329, %v331
    %v333 = vrot.slane %v319, %v332
    %v334 = vcombine.low %v326, %v333
    %337 = vst [vmem:[#allocation5] sm:$0xff] %v317
    %338 = vst [vmem:[#allocation5 + $0x8] sm:$0xff] %v334
    %340 = vset.pattern.permute.xlu0 0
    %341 = vperm.xlu0 %340, %v39
    %v342 = vpop.permute.xlu0 %341
    %v344 = vlaneseq
    %v345 = vshrl.u32 %v344, 7
    %v346 = vsub.s32 0, %v345
    %v347 = vrot.slane %v285, %v346
    %v348 = vlaneseq
    %v349 = vshrl.u32 %v348, 7
    %v350 = vsub.s32 0, %v349
    %v351 = vrot.slane %v286, %v350
    %v352 = vlaneseq
    %v353 = vshrl.u32 %v352, 7
    %v354 = vsub.s32 0, %v353
    %v355 = vrot.slane %v287, %v354
    %v356 = vlaneseq
    %v357 = vshrl.u32 %v356, 7
    %v358 = vsub.s32 0, %v357
    %v359 = vrot.slane %v288, %v358
    %v360 = vlaneseq
    %v361 = vshrl.u32 %v360, 7
    %v362 = vsub.s32 0, %v361
    %v363 = vrot.slane %v289, %v362
    %v364 = vlaneseq
    %v365 = vshrl.u32 %v364, 7
    %v366 = vsub.s32 0, %v365
    %v367 = vrot.slane %v290, %v366
    %v368 = vlaneseq
    %v369 = vshrl.u32 %v368, 7
    %v370 = vsub.s32 0, %v369
    %v371 = vrot.slane %v291, %v370
    %v372 = vlaneseq
    %v373 = vshrl.u32 %v372, 7
    %v374 = vsub.s32 0, %v373
    %v375 = vrot.slane %v292, %v374
    %v376 = vmul.f32 %v342, %v347
    %v377 = vmul.f32 %v342, %v351
    %v378 = vmul.f32 %v342, %v355
    %v379 = vmul.f32 %v342, %v359
    %v380 = vmul.f32 %v342, %v363
    %v381 = vmul.f32 %v342, %v367
    %v382 = vmul.f32 %v342, %v371
    %v383 = vmul.f32 %v342, %v375
    %384 = vset.pattern.permute.xlu0 1
    %385 = vperm.xlu0 %384, %v39
    %v386 = vpop.permute.xlu0 %385
    %v388 = vlaneseq
    %v389 = vshrl.u32 %v388, 7
    %v390 = vsub.s32 1, %v389
    %v391 = vrot.slane %v285, %v390
    %v392 = vlaneseq
    %v393 = vshrl.u32 %v392, 7
    %v394 = vsub.s32 1, %v393
    %v395 = vrot.slane %v286, %v394
    %v396 = vlaneseq
    %v397 = vshrl.u32 %v396, 7
    %v398 = vsub.s32 1, %v397
    %v399 = vrot.slane %v287, %v398
    %v400 = vlaneseq
    %v401 = vshrl.u32 %v400, 7
    %v402 = vsub.s32 1, %v401
    %v403 = vrot.slane %v288, %v402
    %v404 = vlaneseq
    %v405 = vshrl.u32 %v404, 7
    %v406 = vsub.s32 1, %v405
    %v407 = vrot.slane %v289, %v406
    %v408 = vlaneseq
    %v409 = vshrl.u32 %v408, 7
    %v410 = vsub.s32 1, %v409
    %v411 = vrot.slane %v290, %v410
    %v412 = vlaneseq
    %v413 = vshrl.u32 %v412, 7
    %v414 = vsub.s32 1, %v413
    %v415 = vrot.slane %v291, %v414
    %v416 = vlaneseq
    %v417 = vshrl.u32 %v416, 7
    %v418 = vsub.s32 1, %v417
    %v419 = vrot.slane %v292, %v418
    %v420 = vmul.f32 %v386, %v391
    %v421 = vmul.f32 %v386, %v395
    %v422 = vmul.f32 %v386, %v399
    %v423 = vmul.f32 %v386, %v403
    %v424 = vmul.f32 %v386, %v407
    %v425 = vmul.f32 %v386, %v411
    %v426 = vmul.f32 %v386, %v415
    %v427 = vmul.f32 %v386, %v419
    %v428 = vadd.f32 %v376, %v420
    %v429 = vadd.f32 %v377, %v421
    %v430 = vadd.f32 %v378, %v422
    %v431 = vadd.f32 %v379, %v423
    %v432 = vadd.f32 %v380, %v424
    %v433 = vadd.f32 %v381, %v425
    %v434 = vadd.f32 %v382, %v426
    %v435 = vadd.f32 %v383, %v427
    %436 = vst [vmem:[#allocation6] sm:$0x1f] %v428
    %437 = vst [vmem:[#allocation6 + $0x8] sm:$0x1f] %v429
    %438 = vst [vmem:[#allocation6 + $0x10] sm:$0x1f] %v430
    %439 = vst [vmem:[#allocation6 + $0x18] sm:$0x1f] %v431
    %440 = vst [vmem:[#allocation6 + $0x20] sm:$0x1f] %v432
    %441 = vst [vmem:[#allocation6 + $0x28] sm:$0x1f] %v433
    %442 = vst [vmem:[#allocation6 + $0x30] sm:$0x1f] %v434
    %443 = vst [vmem:[#allocation6 + $0x38] sm:$0x1f] %v435
    // Predicated region
    $region18: #{tpu_custom_call.1} parent=1 // pred_check
      _
    $region19: #{tpu_custom_call.1} parent=1 // pred_check_branch
      %445 = sbr.rel (0) target = $region21
    $region20: #{tpu_custom_call.1} parent=1 // pred_region
      %s447 = ssub.s32 256, 256
      %448 = vsyncadd [#allocation4], %s447
      %s450 = sshll.u32 [#allocation5], 4
      %s451 = int_to_ptr.vmem [resolvable:$true] %s450
      %453 = dma.vmem_to_hbm [thread:$0]  %s451, 256, %s3, [#allocation4]
    $region21: #{tpu_custom_call.1} parent=1 // pred_fallthru
      _
    // Predicated region
    $region22: #{tpu_custom_call.1} parent=1 // pred_check
      _
    $region23: #{tpu_custom_call.1} parent=1 // pred_check_branch
      %455 = sbr.rel (0) target = $region25
    $region24: #{tpu_custom_call.1} parent=1 // pred_region
      %s457 = ssub.s32 1024, 1024
      %458 = vsyncadd [#allocation7], %s457
      %s460 = sshll.u32 [#allocation6], 4
      %s461 = int_to_ptr.vmem [resolvable:$true] %s460
      %463 = dma.vmem_to_hbm [thread:$0]  %s461, 1024, %s4, [#allocation7]
    $region25: #{tpu_custom_call.1} parent=1 // pred_fallthru
      _
    // Predicated region
    $region26: #{tpu_custom_call.1} parent=1 // pred_check
      _
    $region27: #{tpu_custom_call.1} parent=1 // pred_check_branch
      %465 = sbr.rel (0) target = $region29
    $region28: #{tpu_custom_call.1} parent=1 // pred_region
      %466 = dma.done [#allocation4], 256
    $region29: #{tpu_custom_call.1} parent=1 // pred_fallthru
      _
    // Predicated region
    $region30: #{tpu_custom_call.1} parent=1 // pred_check
      _
    $region31: #{tpu_custom_call.1} parent=1 // pred_check_branch
      %468 = sbr.rel (0) target = $region33
    $region32: #{tpu_custom_call.1} parent=1 // pred_region
      %469 = dma.done [#allocation7], 1024
    $region33: #{tpu_custom_call.1} parent=1 // pred_fallthru
      _
    %470 = vsyncpa [#allocation3], 1
    %471 = vsyncpa [#allocation4], 1
    %472 = vsyncpa [#allocation7], 1

</llo_original>
